<compile_context>
chip_gen: v5e
topology: v5e:2x2
jax: 0.10.0
libtpu: 0.0.40
codegen_flags: <defaults>
</compile_context>

<pallas_src>
import jax
import jax.numpy as jnp
from jax.experimental import pallas as pl
from jax.experimental.pallas import tpu as pltpu


# ----------------------------- kernel bodies -------------------------------

def pos_emb_kernel(row_ref, out_ref):
    # row_ref: (1, chunk)  resident slice of the flattened table[:S] row.
    # out_ref: (Bt, chunk) one (batch-tile, lane-chunk) block of the output.
    # Stride-0 sublane-broadcast read of row 0 -> (Bt, chunk): the fill stays
    # on the vld/vst slots only (no VPU/XLU broadcast materialization).
    out_ref[...] = row_ref[pl.ds(0, out_ref.shape[0], stride=0), :]


def pos_emb_kernel_bcast(row_ref, out_ref):
    # Conservative fallback body (only used if the optimized specs fail to lower).
    out_ref[...] = jnp.broadcast_to(row_ref[...], out_ref.shape)


# ----------------------------- tiling policy -------------------------------

def _ceil_to(x: int, m: int) -> int:
    return ((x + m - 1) // m) * m


def _round_down(x: int, m: int) -> int:
    return max(m, (x // m) * m)


def _tpu_vmem_physical_bytes() -> int:
    try:
        cap = int(getattr(pltpu.get_tpu_info(), "vmem_capacity_bytes", 0))
        if cap > 0:
            return cap
    except Exception:
        pass
    return 64 << 20  # conservative default (v7x per-TC VMEM)


def _pick_tiling(batch_size: int, row_elems: int, itemsize: int,
                 budget: int, phys: int):
    """Choose (lane chunk, batch tile, vmem_limit) so the pipeline fits in budget.

    VMEM accounting (TPU (8,128) layout padding):
      input  row buffer : (1, chunk) pads to 8 sublanes -> 8 * chunk * itemsize
      output batch tile : ceil8(block_batch) * chunk * itemsize, double-buffered
    """
    out_bufs = 2
    bb_min = batch_size if batch_size <= 8 else 8
    bb_min_pad = _ceil_to(bb_min, 8)

    # 1) lane chunk: full row when it fits alongside a minimal batch tile,
    #    else a 128-aligned chunk sized to the budget.
    denom = itemsize * (8 * 1 + out_bufs * bb_min_pad)     # Buffered(1) input
    max_chunk = max(128, budget // denom)
    chunk = row_elems if row_elems <= max_chunk else _round_down(max_chunk, 128)

    # 2) batch tile: fill the remaining budget with the double-buffered output.
    remaining = budget - 8 * chunk * itemsize
    bb_cap = max(1, remaining // (out_bufs * chunk * itemsize))
    if bb_cap >= batch_size:
        block_batch = batch_size                    # full extent -> always legal
    elif bb_cap >= 8:
        block_batch = _round_down(bb_cap, 8)        # sublane-aligned, ragged last
    else:
        block_batch = min(8, batch_size)            # smallest legal tile

    # 3) v7x: if everything collapsed to a single grid step, split the batch so
    #    both TensorCores get writeback work (only when still sublane-legal).
    num_chunks = pl.cdiv(row_elems, chunk)
    if num_chunks == 1 and block_batch == batch_size and batch_size >= 16:
        block_batch = min(batch_size, _ceil_to(batch_size // 2, 8))

    # 4) explicit scoped-VMEM limit from the block math (conservatively assumes
    #    a double-buffered input so the fallback specs also fit).
    footprint = itemsize * chunk * (8 * 2 + out_bufs * _ceil_to(block_batch, 8))
    vmem_limit = max(16 << 20, footprint + footprint // 4 + (1 << 20))
    vmem_limit = int(min(vmem_limit, max(16 << 20, phys // 2)))
    return int(chunk), int(block_batch), vmem_limit


# ------------------------------- wrapper ------------------------------------

def _pos_emb_call(row, batch_size, row_elems, chunk, block_batch, vmem_limit,
                  *, optimized: bool):
    num_chunks = pl.cdiv(row_elems, chunk)
    num_btiles = pl.cdiv(batch_size, block_batch)

    if optimized:
        # Constant block index along the batch axis + single buffer: the row
        # chunk is fetched once per lane chunk and stays resident.
        in_spec = pl.BlockSpec((1, chunk), lambda c, b: (0, c),
                               pipeline_mode=pl.Buffered(1))
        kernel = pos_emb_kernel
    else:
        in_spec = pl.BlockSpec((1, chunk), lambda c, b: (0, c))
        kernel = pos_emb_kernel_bcast

    return pl.pallas_call(
        kernel,
        out_shape=jax.ShapeDtypeStruct((batch_size, row_elems), row.dtype),
        grid=(num_chunks, num_btiles),           # batch innermost -> row stays resident
        in_specs=[in_spec],
        out_specs=pl.BlockSpec((block_batch, chunk), lambda c, b: (b, c)),
        compiler_params=pltpu.CompilerParams(
            dimension_semantics=("parallel", "parallel"),
            vmem_limit_bytes=vmem_limit),
    )(row)


def position_embedding(table: jax.Array, batch_size: int, seq_length: int) -> jax.Array:
    """Pallas equivalent of PositionEmbedding.forward(batch_size, seq_length, device)."""
    max_length, emb_size = table.shape
    assert seq_length <= max_length

    row_elems = seq_length * emb_size
    # Wrapper-side slice + flatten (pure layout plumbing): positions are
    # arange(S), so the gather is exactly table[:S]; flattening keeps the
    # output block lane-dense even when emb_size < 128.
    row = table[:seq_length].reshape(1, row_elems)

    itemsize = table.dtype.itemsize
    phys = _tpu_vmem_physical_bytes()
    budget = max(4 << 20, min(phys // 4, 16 << 20))   # fits every generation's scoped limit
    chunk, block_batch, vmem_limit = _pick_tiling(
        batch_size, row_elems, itemsize, budget, phys)

    try:
        out2d = _pos_emb_call(row, batch_size, row_elems, chunk, block_batch,
                              vmem_limit, optimized=True)
    except Exception:
        # Fallback if this JAX build rejects Buffered(1) / stride-0 slices.
        out2d = _pos_emb_call(row, batch_size, row_elems, chunk, block_batch,
                              vmem_limit, optimized=False)

    return out2d.reshape(batch_size, seq_length, emb_size)


# --------------------------------- demo --------------------------------------

if __name__ == "__main__":
    # Small, deterministic setup consistent with the module:
    #   emb_size=32, max_length=512 (module default), forward(batch=2, seq=8).
    emb_size = 32
    max_length = 512
    batch_size = 2
    seq_length = 8

    key = jax.random.PRNGKey(0)
    # nn.Embedding default init: N(0, 1)
    table = jax.random.normal(key, (max_length, emb_size), dtype=jnp.float32)

    out = position_embedding(table, batch_size, seq_length)
    out = jax.block_until_ready(out)

    # Reference: plain-JAX embedding lookup with arange ids repeated over batch.
    ref = jnp.broadcast_to(table[:seq_length][None], (batch_size, seq_length, emb_size))

    assert out.shape == (batch_size, seq_length, emb_size)
    assert out.dtype == jnp.float32
    assert jnp.allclose(out, ref, atol=1e-6), "mismatch vs reference embedding lookup"

    print("KERNEL_OK")
</pallas_src>

<mosaic_0001>
module attributes {stable_mosaic.version = 11 : i64} {
  func.func @pos_emb_kernel(%arg0: i32, %arg1: i32, %arg2: memref<1x256xf32, #tpu.memory_space<vmem>>, %arg3: memref<2x256xf32, #tpu.memory_space<vmem>>) attributes {dimension_semantics = [#tpu.dimension_semantics<parallel>, #tpu.dimension_semantics<parallel>], iteration_bounds = array<i64: 1, 1>, scalar_prefetch = 0 : i64, scratch_operands = 0 : i64, tpu.core_type = #tpu.core_type<tc>, window_params = [{pipeline_mode = #tpu.pipeline_mode<synchronous>, transform_indices = @transform_0, window_bounds = array<i64: 1, 256>}, {transform_indices = @transform_1, window_bounds = array<i64: 2, 256>}]} {
    %c0 = arith.constant 0 : index
    %c0_0 = arith.constant 0 : index
    %0 = tpu.strided_load %arg2[%c0, %c0_0] {strides = array<i32: 0, 1>} : memref<1x256xf32, #tpu.memory_space<vmem>>, vector<2x256xf32>
    %c0_1 = arith.constant 0 : index
    %c0_2 = arith.constant 0 : index
    %1 = vector.load %arg3[%c0_1, %c0_2] : memref<2x256xf32, #tpu.memory_space<vmem>>, vector<2x256xf32>
    tpu.vector_store %arg3[%c0_1, %c0_2], %0 {strides = array<i32>} : memref<2x256xf32, #tpu.memory_space<vmem>>, vector<2x256xf32>,
    return
  }
  func.func @transform_0(%arg0: i32, %arg1: i32) -> (i32, i32) {
    %c0_i32 = arith.constant 0 : i32
    %c0_i32_0 = arith.constant 0 : i32
    return %c0_i32, %arg0 : i32, i32
  }
  func.func @transform_1(%arg0: i32, %arg1: i32) -> (i32, i32) {
    %c0_i32 = arith.constant 0 : i32
    return %arg1, %arg0 : i32, i32
  }
}

module attributes {stable_mosaic.version = 11 : i64} {
  func.func @pos_emb_kernel_bcast(%arg0: i32, %arg1: i32, %arg2: memref<1x256xf32, #tpu.memory_space<vmem>>, %arg3: memref<2x256xf32, #tpu.memory_space<vmem>>) attributes {dimension_semantics = [#tpu.dimension_semantics<parallel>, #tpu.dimension_semantics<parallel>], iteration_bounds = array<i64: 1, 1>, scalar_prefetch = 0 : i64, scratch_operands = 0 : i64, tpu.core_type = #tpu.core_type<tc>, window_params = [{transform_indices = @transform_0, window_bounds = array<i64: 1, 256>}, {transform_indices = @transform_1, window_bounds = array<i64: 2, 256>}]} {
    %c0 = arith.constant 0 : index
    %c0_0 = arith.constant 0 : index
    %0 = vector.load %arg2[%c0, %c0_0] : memref<1x256xf32, #tpu.memory_space<vmem>>, vector<1x256xf32>
    %1 = vector.shape_cast %0 : vector<1x256xf32> to vector<1x256xf32>
    %2 = vector.broadcast %1 : vector<1x256xf32> to vector<2x256xf32>
    %c0_1 = arith.constant 0 : index
    %c0_2 = arith.constant 0 : index
    %3 = vector.load %arg3[%c0_1, %c0_2] : memref<2x256xf32, #tpu.memory_space<vmem>>, vector<2x256xf32>
    tpu.vector_store %arg3[%c0_1, %c0_2], %2 {strides = array<i32>} : memref<2x256xf32, #tpu.memory_space<vmem>>, vector<2x256xf32>,
    return
  }
  func.func @transform_0(%arg0: i32, %arg1: i32) -> (i32, i32) {
    %c0_i32 = arith.constant 0 : i32
    %c0_i32_0 = arith.constant 0 : i32
    return %c0_i32, %arg0 : i32, i32
  }
  func.func @transform_1(%arg0: i32, %arg1: i32) -> (i32, i32) {
    %c0_i32 = arith.constant 0 : i32
    return %arg1, %arg0 : i32, i32
  }
}

</mosaic_0001>

<llo_original>
// kernel: tpu_custom_call.1
$region0: #{tpu_custom_call.1}
  #allocation0 [shape = 'u32[]', space=smem, size = 0x4, offset = 0x4, fixed_abs, tag = 'smem constant byte address 0x4 - core index']
  #allocation1 [shape = 'u32[72,128]{1,0:T(1,128)}', space=vmem, size = 0x9000, scoped, tag = 'internal scratch']
  %s0 = inlined_call_operand.hbm [shape: f32[1,256], index: 0, kind: input, shape index: {}]
  %s1 = inlined_call_operand.hbm [shape: f32[2,256], index: 1, kind: output, shape index: {}]
  %s2 = sld [smem:[#allocation0]]
  $region18: #{tpu_custom_call.1} parent=0
    _
  %s4 = ssub.s32 1, %s2
  %s5 = scalar_select 0, %s4, %s2
  $region1: #{tpu_custom_call.1} parent=0
    #allocation2 [shape = 'u8[1024]{0}', space=vmem, size = 0x400, scoped, tag = 'input window, operand 0, single buffered']
    #allocation3 [shape = 's32[1]{0}', space=sflag, size = 0x4, scoped, tag = 'scoped memory for tpu_custom_call.1']
    #allocation4 [shape = 's32[1]{0}', space=sflag, size = 0x4, scoped, tag = 'scoped memory for tpu_custom_call.1']
    #allocation5 [shape = 'u8[2048]{0}', space=vmem, size = 0x800, scoped, tag = 'output window, operand 0, single buffered']
    %6 = vsyncpa [#allocation3], 0
    %7 = vsyncpa [#allocation4], 0
    // Predicated region
    $region2: #{tpu_custom_call.1} parent=1 // pred_check
      _
    $region3: #{tpu_custom_call.1} parent=1 // pred_check_branch
      %9 = sbr.rel (0) target = $region5
    $region4: #{tpu_custom_call.1} parent=1 // pred_region
      %11 = vsyncadd [#allocation3], 0
      %s13 = sshll.u32 %s0, 4
      %s14 = int_to_ptr.hbm [resolvable:$true] %s13
      %s15 = sshll.u32 [#allocation2], 4
      %s16 = int_to_ptr.vmem [resolvable:$true] %s15
      %18 = dma.hbm_to_vmem [thread:$0]  %s14, 32, %s16, [#allocation3]
    $region5: #{tpu_custom_call.1} parent=1 // pred_fallthru
      _
    // Predicated region
    $region6: #{tpu_custom_call.1} parent=1 // pred_check
      _
    $region7: #{tpu_custom_call.1} parent=1 // pred_check_branch
      %20 = sbr.rel (0) target = $region9
    $region8: #{tpu_custom_call.1} parent=1 // pred_region
      %22 = dma.done [#allocation3], 32
    $region9: #{tpu_custom_call.1} parent=1 // pred_fallthru
      _
    %v23 = vld [vmem:[#allocation2] sm:$0x3]
    %v25 = vperm.slane %v23, 0
    %v26 = vperm.slane %v23, 1
    %v27 = vrot.slane %v26, 6
    %vm28 = vcmask 1041408
    %v29 = vsel %vm28, %v25, %v27
    %31 = vst [vmem:[#allocation5] sm:$0xf] %v29
    // Predicated region
    $region10: #{tpu_custom_call.1} parent=1 // pred_check
      _
    $region11: #{tpu_custom_call.1} parent=1 // pred_check_branch
      %33 = sbr.rel (0) target = $region13
    $region12: #{tpu_custom_call.1} parent=1 // pred_region
      %35 = vsyncadd [#allocation4], 0
      %s37 = sshll.u32 [#allocation5], 4
      %s38 = int_to_ptr.vmem [resolvable:$true] %s37
      %s39 = sshll.u32 %s1, 4
      %s40 = int_to_ptr.hbm [resolvable:$true] %s39
      %42 = dma.vmem_to_hbm [thread:$0]  %s38, 64, %s40, [#allocation4]
    $region13: #{tpu_custom_call.1} parent=1 // pred_fallthru
      _
    // Predicated region
    $region14: #{tpu_custom_call.1} parent=1 // pred_check
      _
    $region15: #{tpu_custom_call.1} parent=1 // pred_check_branch
      %44 = sbr.rel (0) target = $region17
    $region16: #{tpu_custom_call.1} parent=1 // pred_region
      %46 = dma.done [#allocation4], 64
    $region17: #{tpu_custom_call.1} parent=1 // pred_fallthru
      _
    %47 = vsyncpa [#allocation3], 1
    %48 = vsyncpa [#allocation4], 1

</llo_original>
